<compile_context>
chip_gen: v5e
topology: v5e:2x2
jax: 0.10.0
libtpu: 0.0.40
codegen_flags: <defaults>
</compile_context>

<pallas_src>
import functools
import math

import jax
import jax.numpy as jnp
from jax.experimental import pallas as pl
from jax.experimental.pallas import tpu as pltpu


_BBOX_XFORM_CLIP = math.log(1000.0 / 16.0)
_NEG_INF = -1e30


def _round_up(x, m):
    return ((x + m - 1) // m) * m


# ----------------------------------------------------------------------------
# Fused Pallas kernel: fc6/fc7 (+ReLU), packed heads, softmax, box decode, clip
# ----------------------------------------------------------------------------

def _fused_box_head_kernel(x_ref,                     # (TM, TK|Dp) bf16 pooled-feature tile
                           w6_ref, b6_ref,            # (TK|Dp, Hp) bf16 / (1, Hp) f32
                           w7_ref, b7_ref,            # (Hp, Hp)    bf16 / (1, Hp) f32
                           wh_ref, bh_ref,            # (Hp, NH)    bf16 / (1, NH) f32
                           size_ref, ctr_ref,         # (TM, NH) f32: widths|heights, ctr_x|ctr_y
                           clip_ref,                  # (1, NH)  f32: img_w-1 | img_h-1 per column
                           feat_ref,                  # (TM, Hp) f32 out: fc7 features (fc6 acc)
                           out_ref,                   # (TM, NH) f32 out: [boxes (4n) | scores (n)]
                           *, num_classes, k_steps):
    nc = num_classes
    nh = out_ref.shape[-1]

    def finalize(acc_f32):
        # fc6 bias + ReLU, then fc7 + ReLU (bf16 MXU, f32 accumulation).
        h6 = jnp.maximum(acc_f32 + b6_ref[...], 0.0)
        h7 = jnp.maximum(
            jnp.dot(h6.astype(jnp.bfloat16), w7_ref[...],
                    preferred_element_type=jnp.float32) + b7_ref[...], 0.0)
        feat_ref[...] = h7

        # Packed heads block: columns [0, 4n) = bbox deltas in the reference class-major
        # [dx, dy, dw, dh] order (BoxCoder weights folded into the matrix), [4n, 5n) = cls logits.
        heads = jnp.dot(h7.astype(jnp.bfloat16), wh_ref[...],
                        preferred_element_type=jnp.float32) + bh_ref[...]

        col = jax.lax.broadcasted_iota(jnp.int32, heads.shape, 1)

        # --- softmax over the real class logits (exact division for the denominator) ---
        is_cls = jnp.logical_and(col >= 4 * nc, col < 5 * nc)
        logits = jnp.where(is_cls, heads, _NEG_INF)
        m = jnp.max(logits, axis=-1, keepdims=True)
        e = jnp.exp(logits - m)
        probs = e / jnp.sum(e, axis=-1, keepdims=True)

        # --- box decode directly in the interleaved [x1, y1, x2, y2]-per-class layout ---
        size_c = size_ref[...]                                              # widths / heights
        ctr_c = ctr_ref[...]                                                # ctr_x / ctr_y
        pred_ctr = heads * size_c + ctr_c                                   # valid at col%4 in {0,1}
        pred_sz = jnp.exp(jnp.minimum(heads, _BBOX_XFORM_CLIP)) * size_c    # valid at col%4 in {2,3}
        sz_ahead = pltpu.roll(pred_sz, shift=nh - 2, axis=1)                # value from col + 2
        ctr_back = pltpu.roll(pred_ctr, shift=2, axis=1)                    # value from col - 2
        mod4 = jnp.bitwise_and(col, 3)
        decoded = jnp.where(mod4 < 2,
                            pred_ctr - 0.5 * sz_ahead,                      # x1 / y1
                            ctr_back + 0.5 * pred_sz - 1.0)                 # x2 / y2
        decoded = jnp.clip(decoded, 0.0, clip_ref[...])                     # clip to image

        # One combined lane-dense output block: [boxes (4n) | scores (n) | pad].
        out_ref[...] = jnp.where(col < 4 * nc, decoded, probs)

    if k_steps > 1:
        k = pl.program_id(1)

        @pl.when(k == 0)
        def _init():
            feat_ref[...] = jnp.zeros_like(feat_ref)

        # fc6 partial contraction; accumulate into the k-resident f32 feat output block.
        feat_ref[...] += jnp.dot(x_ref[...], w6_ref[...], preferred_element_type=jnp.float32)

        @pl.when(k == k_steps - 1)
        def _final():
            finalize(feat_ref[...])
    else:
        # Single K step: straight-line kernel, no accumulator / predication machinery.
        finalize(jnp.dot(x_ref[...], w6_ref[...], preferred_element_type=jnp.float32))


def box_head_forward(pooled_list, props_list, img_h, img_w, kp, *, num_classes, hidden, d, tk):
    """pooled_list: per-image bf16 (R_i, d) pooled features; props_list: per-image (R_i, 4) xyxy.

    Returns (features (R, hidden) f32, probs (R, n) f32, boxes (R, 4n) f32 interleaved)."""
    w6p, b6p, w7p, b7p, whp, bhp = kp["w6"], kp["b6"], kp["w7"], kp["b7"], kp["wh"], kp["bh"]
    d_pad, h_pad = w6p.shape
    nh = whp.shape[1]
    k_steps = d_pad // tk

    counts = [p.shape[0] for p in pooled_list]
    r = sum(counts)

    # Row tile: multiple of 16 (bf16 sublane pack), capped so the parallel row axis has >= 2
    # tiles at medium/large R (v7x has two TensorCores).
    tm = min(256, _round_up(max((r + 1) // 2, 16), 16))
    r_pad = _round_up(r, tm)

    # Padded bf16 feature slab + padded proposals, filled per image (no extra f32 pad/cast pass).
    x_pad = jnp.zeros((r_pad, d_pad), jnp.bfloat16)
    props = jnp.zeros((r_pad, 4), jnp.float32)
    start = 0
    for pooled_i, props_i in zip(pooled_list, props_list):
        ni = pooled_i.shape[0]
        x_pad = x_pad.at[start:start + ni, :d].set(pooled_i)
        props = props.at[start:start + ni, :].set(props_i.astype(jnp.float32))
        start += ni

    # Lane-dense per-row geometry: widths / ctr_x at even columns, heights / ctr_y at odd columns.
    widths = props[:, 2] - props[:, 0] + 1.0
    heights = props[:, 3] - props[:, 1] + 1.0
    ctr_x = props[:, 0] + 0.5 * widths
    ctr_y = props[:, 1] + 0.5 * heights
    even = (jnp.arange(nh) % 2 == 0)[None, :]
    size_cols = jnp.where(even, widths[:, None], heights[:, None]).astype(jnp.float32)
    ctr_cols = jnp.where(even, ctr_x[:, None], ctr_y[:, None]).astype(jnp.float32)
    clip_row = jnp.where(even, float(img_w) - 1.0, float(img_h) - 1.0).astype(jnp.float32)

    kernel = functools.partial(_fused_box_head_kernel, num_classes=num_classes, k_steps=k_steps)
    resident = pl.Buffered(1)          # k-invariant operands: single-buffer (halve their VMEM)

    if k_steps > 1:
        grid = (r_pad // tm, k_steps)
        xspec = pl.BlockSpec((tm, tk), lambda i, k: (i, k))
        w6spec = pl.BlockSpec((tk, h_pad), lambda i, k: (k, 0))          # streamed over K
        cmap = lambda i, k: (0, 0)
        rmap = lambda i, k: (i, 0)
        dimsem = ("parallel", "arbitrary")
    else:
        grid = (r_pad // tm,)
        xspec = pl.BlockSpec((tm, d_pad), lambda i: (i, 0))
        w6spec = pl.BlockSpec((d_pad, h_pad), lambda i: (0, 0), pipeline_mode=resident)
        cmap = lambda i: (0, 0)
        rmap = lambda i: (i, 0)
        dimsem = ("parallel",)

    flops = 2 * r_pad * (d_pad * h_pad + h_pad * h_pad + h_pad * nh)
    bytes_accessed = (x_pad.size * 2 + w6p.size * 2 + w7p.size * 2 + whp.size * 2
                      + (size_cols.size + ctr_cols.size) * 4
                      + r_pad * (h_pad + nh) * 4)

    feat_o, comb_o = pl.pallas_call(
        kernel,
        out_shape=(jax.ShapeDtypeStruct((r_pad, h_pad), jnp.float32),
                   jax.ShapeDtypeStruct((r_pad, nh), jnp.float32)),
        grid_spec=pltpu.PrefetchScalarGridSpec(
            num_scalar_prefetch=0,
            grid=grid,
            in_specs=[
                xspec,                                                       # pooled features
                w6spec,                                                      # fc6 weight
                pl.BlockSpec((1, h_pad), cmap, pipeline_mode=resident),      # fc6 bias
                pl.BlockSpec((h_pad, h_pad), cmap, pipeline_mode=resident),  # fc7 weight
                pl.BlockSpec((1, h_pad), cmap, pipeline_mode=resident),      # fc7 bias
                pl.BlockSpec((h_pad, nh), cmap, pipeline_mode=resident),     # packed heads weight
                pl.BlockSpec((1, nh), cmap, pipeline_mode=resident),         # packed heads bias
                pl.BlockSpec((tm, nh), rmap),                                # size columns
                pl.BlockSpec((tm, nh), rmap),                                # center columns
                pl.BlockSpec((1, nh), cmap, pipeline_mode=resident),         # clip limits
            ],
            out_specs=[
                pl.BlockSpec((tm, h_pad), rmap),                             # fc7 features
                pl.BlockSpec((tm, nh), rmap),                                # [boxes | scores]
            ],
        ),
        compiler_params=pltpu.CompilerParams(
            dimension_semantics=dimsem,
            # 32 MiB is safe on v7x's 64 MiB physical VMEM; raise toward ~100 MiB on v5e/v6e only
            # if tiles are grown for production sizes.
            vmem_limit_bytes=32 * 1024 * 1024,
        ),
        cost_estimate=pl.CostEstimate(flops=flops, transcendentals=2 * r_pad * nh,
                                      bytes_accessed=bytes_accessed),
    )(x_pad, w6p, b6p, w7p, b7p, whp, bhp, size_cols, ctr_cols, clip_row)

    n = num_classes
    x_out = feat_o[:r, :hidden]
    boxes = comb_o[:r, :4 * n]              # already interleaved [x1, y1, x2, y2] per class
    probs = comb_o[:r, 4 * n:5 * n]
    return x_out, probs, boxes


# ----------------------------------------------------------------------------
# ROIAlign as separable interpolation matmuls (bf16, MXU-friendly, no per-sample gathers)
# ----------------------------------------------------------------------------

def _interp_matrix(start, bin_size, pooled_size, sampling_ratio, axis_size):
    """Per-ROI interpolation + average-pooling weights along one spatial axis: (R, P, A)."""
    s = sampling_ratio
    frac = (jnp.arange(s, dtype=jnp.float32) + 0.5) / s
    bins = jnp.arange(pooled_size, dtype=jnp.float32)
    pos = (start[:, None, None]
           + (bins[None, :, None] + frac[None, None, :]) * bin_size[:, None, None])
    # TODO(synk): reference bilinear_interpolate zeroes samples outside [-1, size]; we clamp.
    pos = jnp.clip(pos, 0.0, axis_size - 1.0)
    p0 = jnp.floor(pos)
    p1 = jnp.minimum(p0 + 1.0, axis_size - 1.0)
    l = pos - p0
    grid = jnp.arange(axis_size, dtype=jnp.float32)
    w = ((grid[None, None, None, :] == p0[..., None]).astype(jnp.float32) * (1.0 - l)[..., None]
         + (grid[None, None, None, :] == p1[..., None]).astype(jnp.float32) * l[..., None])
    return w.mean(axis=2)


def roi_align_matmul(feat_chw, boxes_xyxy, output_size, spatial_scale, sampling_ratio):
    """feat_chw: (C, H, W); boxes: (R, 4) xyxy. Returns bf16 (R, C*P*P) pooled features."""
    _, h, w = feat_chw.shape
    p = output_size
    x1 = boxes_xyxy[:, 0] * spatial_scale
    y1 = boxes_xyxy[:, 1] * spatial_scale
    x2 = boxes_xyxy[:, 2] * spatial_scale
    y2 = boxes_xyxy[:, 3] * spatial_scale
    roi_w = jnp.maximum(x2 - x1, 1.0)
    roi_h = jnp.maximum(y2 - y1, 1.0)
    wy = _interp_matrix(y1, roi_h / p, p, sampling_ratio, h).astype(jnp.bfloat16)   # (R, P, H)
    wx = _interp_matrix(x1, roi_w / p, p, sampling_ratio, w).astype(jnp.bfloat16)   # (R, P, W)
    f = feat_chw.astype(jnp.bfloat16)
    # pooled[r, c, i, j] = sum_h sum_w wy[r, i, h] * feat[c, h, w] * wx[r, j, w]
    t = jnp.einsum('rph,chw->rcpw', wy, f,
                   preferred_element_type=jnp.float32).astype(jnp.bfloat16)
    out = jnp.einsum('rcpw,rqw->rcpq', t, wx, preferred_element_type=jnp.float32)
    return out.astype(jnp.bfloat16).reshape(out.shape[0], -1)


# ----------------------------------------------------------------------------
# ROIBoxHead (inference path)
# ----------------------------------------------------------------------------

class ROIBoxHeadPallas:
    def __init__(self, in_channels=4, resolution=7, representation_size=32,
                 num_classes=5, spatial_scale=1.0, sampling_ratio=2,
                 key=jax.random.PRNGKey(42)):
        self.resolution = resolution
        self.spatial_scale = spatial_scale
        self.sampling_ratio = sampling_ratio
        self.num_classes = num_classes
        self.hidden = representation_size

        d = in_channels * resolution * resolution
        h = representation_size
        n = num_classes
        self.d = d

        ks = jax.random.split(key, 4)
        w6 = jax.random.normal(ks[0], (d, h), jnp.float32) * 0.01       # fc6
        b6 = jnp.zeros((h,), jnp.float32)
        w7 = jax.random.normal(ks[1], (h, h), jnp.float32) * 0.01       # fc7
        b7 = jnp.zeros((h,), jnp.float32)
        wc = jax.random.normal(ks[2], (h, n), jnp.float32) * 0.01       # cls_score
        bc = jnp.zeros((n,), jnp.float32)
        wb = jax.random.normal(ks[3], (h, 4 * n), jnp.float32) * 0.001  # bbox_pred
        bb = jnp.zeros((4 * n,), jnp.float32)
        self.params = dict(w6=w6, b6=b6, w7=w7, b7=b7, wc=wc, bc=bc, wb=wb, bb=bb)

        # --- padded, bf16, lane-dense kernel parameters ---
        self.tk = min(512, _round_up(d, 128))        # fc6 K tile (multiple of 128)
        d_pad = _round_up(d, self.tk)
        h_pad = _round_up(h, 128)
        nh = _round_up(5 * n, 128)                   # packed: [bbox deltas (4n) | cls (n) | pad]

        w6p = jnp.zeros((d_pad, h_pad), jnp.float32).at[:d, :h].set(w6)
        w7p = jnp.zeros((h_pad, h_pad), jnp.float32).at[:h, :h].set(w7)
        b6p = jnp.zeros((1, h_pad), jnp.float32).at[0, :h].set(b6)
        b7p = jnp.zeros((1, h_pad), jnp.float32).at[0, :h].set(b7)

        # Single packed heads block: BoxCoder weights (10, 10, 5, 5) folded into the bbox columns
        # (kept in the reference class-major interleaved [dx, dy, dw, dh] order), cls appended.
        scale = jnp.tile(jnp.array([0.1, 0.1, 0.2, 0.2], jnp.float32), n)
        whp = jnp.zeros((h_pad, nh), jnp.float32)
        bhp = jnp.zeros((1, nh), jnp.float32)
        whp = whp.at[:h, 0:4 * n].set(wb * scale[None, :])
        bhp = bhp.at[0, 0:4 * n].set(bb * scale)
        whp = whp.at[:h, 4 * n:5 * n].set(wc)
        bhp = bhp.at[0, 4 * n:5 * n].set(bc)

        self.kparams = dict(
            w6=w6p.astype(jnp.bfloat16), b6=b6p,
            w7=w7p.astype(jnp.bfloat16), b7=b7p,
            wh=whp.astype(jnp.bfloat16), bh=bhp,
        )

    def __call__(self, features, proposals):
        """features: list of (N, C, H, W) maps (single level used); proposals: per-image (R_i, 4)."""
        feat = features[0]
        img_h, img_w = feat.shape[2], feat.shape[3]

        # ROIAlign via separable interpolation matmuls (bf16), per image.
        pooled = [roi_align_matmul(feat[i], proposals[i], self.resolution,
                                   self.spatial_scale, self.sampling_ratio)
                  for i in range(len(proposals))]

        x, probs, boxes = box_head_forward(
            pooled, proposals, img_h, img_w, self.kparams,
            num_classes=self.num_classes, hidden=self.hidden, d=self.d, tk=self.tk)

        # Split back per image (BoxList-like dicts).
        result = []
        start = 0
        for p in proposals:
            n = p.shape[0]
            result.append(dict(boxes=boxes[start:start + n],
                               scores=probs[start:start + n]))
            start += n

        return x, result, {}, x, None


# ----------------------------------------------------------------------------
# Demo
# ----------------------------------------------------------------------------

if __name__ == "__main__":
    key = jax.random.PRNGKey(0)
    k_feat, k_b1, k_b2, k_params = jax.random.split(key, 4)

    N, C, H, W = 2, 4, 16, 16
    features = [jax.random.normal(k_feat, (N, C, H, W), jnp.float32)]

    def make_boxes(k, n, img_h, img_w):
        xy = jax.random.uniform(k, (n, 2), minval=0.0, maxval=8.0)
        wh = jax.random.uniform(jax.random.fold_in(k, 1), (n, 2), minval=2.0, maxval=6.0)
        x1y1 = xy
        x2y2 = jnp.minimum(xy + wh, jnp.array([img_w - 1.0, img_h - 1.0]))
        return jnp.concatenate([x1y1, x2y2], axis=1).astype(jnp.float32)

    proposals = [make_boxes(k_b1, 8, H, W), make_boxes(k_b2, 8, H, W)]

    head = ROIBoxHeadPallas(in_channels=C, resolution=7, representation_size=32,
                            num_classes=5, spatial_scale=1.0, sampling_ratio=2,
                            key=k_params)

    x, result, losses, da_feas, da_labels = head(features, proposals)

    jax.block_until_ready(x)
    for r in result:
        jax.block_until_ready(r["boxes"])
        jax.block_until_ready(r["scores"])

    assert x.shape == (16, 32)
    assert result[0]["boxes"].shape == (8, 4 * 5)
    assert result[0]["scores"].shape == (8, 5)
    assert losses == {}
    score_sums = jnp.sum(result[0]["scores"], axis=-1)
    assert bool(jnp.all(jnp.abs(score_sums - 1.0) < 1e-3))
    all_boxes = jnp.concatenate([r["boxes"] for r in result], axis=0)
    assert bool(jnp.all(jnp.isfinite(all_boxes)))
    assert bool(jnp.all(all_boxes >= 0.0)) and bool(jnp.all(all_boxes <= max(H, W) - 1.0))

    print("KERNEL_OK")
</pallas_src>

<mosaic_0001>
module attributes {stable_mosaic.version = 11 : i64} {
  func.func @_fused_box_head_kernel(%arg0: i32, %arg1: memref<16x256xbf16, #tpu.memory_space<vmem>>, %arg2: memref<256x128xbf16, #tpu.memory_space<vmem>>, %arg3: memref<1x128xf32, #tpu.memory_space<vmem>>, %arg4: memref<128x128xbf16, #tpu.memory_space<vmem>>, %arg5: memref<1x128xf32, #tpu.memory_space<vmem>>, %arg6: memref<128x128xbf16, #tpu.memory_space<vmem>>, %arg7: memref<1x128xf32, #tpu.memory_space<vmem>>, %arg8: memref<16x128xf32, #tpu.memory_space<vmem>>, %arg9: memref<16x128xf32, #tpu.memory_space<vmem>>, %arg10: memref<1x128xf32, #tpu.memory_space<vmem>>, %arg11: memref<16x128xf32, #tpu.memory_space<vmem>>, %arg12: memref<16x128xf32, #tpu.memory_space<vmem>>) attributes {dimension_semantics = [#tpu.dimension_semantics<parallel>], iteration_bounds = array<i64: 1>, scalar_prefetch = 0 : i64, scratch_operands = 0 : i64, tpu.core_type = #tpu.core_type<tc>, window_params = [{transform_indices = @transform_0, window_bounds = array<i64: 16, 256>}, {pipeline_mode = #tpu.pipeline_mode<synchronous>, transform_indices = @transform_1, window_bounds = array<i64: 256, 128>}, {pipeline_mode = #tpu.pipeline_mode<synchronous>, transform_indices = @transform_2, window_bounds = array<i64: 1, 128>}, {pipeline_mode = #tpu.pipeline_mode<synchronous>, transform_indices = @transform_3, window_bounds = array<i64: 128, 128>}, {pipeline_mode = #tpu.pipeline_mode<synchronous>, transform_indices = @transform_4, window_bounds = array<i64: 1, 128>}, {pipeline_mode = #tpu.pipeline_mode<synchronous>, transform_indices = @transform_5, window_bounds = array<i64: 128, 128>}, {pipeline_mode = #tpu.pipeline_mode<synchronous>, transform_indices = @transform_6, window_bounds = array<i64: 1, 128>}, {transform_indices = @transform_7, window_bounds = array<i64: 16, 128>}, {transform_indices = @transform_8, window_bounds = array<i64: 16, 128>}, {pipeline_mode = #tpu.pipeline_mode<synchronous>, transform_indices = @transform_9, window_bounds = array<i64: 1, 128>}, {transform_indices = @transform_10, window_bounds = array<i64: 16, 128>}, {transform_indices = @transform_11, window_bounds = array<i64: 16, 128>}]} {
    %c0 = arith.constant 0 : index
    %c0_0 = arith.constant 0 : index
    %0 = vector.load %arg1[%c0, %c0_0] : memref<16x256xbf16, #tpu.memory_space<vmem>>, vector<16x256xbf16>
    %c0_1 = arith.constant 0 : index
    %c0_2 = arith.constant 0 : index
    %1 = vector.load %arg2[%c0_1, %c0_2] : memref<256x128xbf16, #tpu.memory_space<vmem>>, vector<256x128xbf16>
    %cst = arith.constant dense<0.000000e+00> : vector<16x128xf32>
    %2 = tpu.matmul %0, %1, %cst {dimension_numbers = #tpu.dot_dimension_numbers<[1], [0], [0], [1], [0, 0, 1, 1], [], []>} : vector<16x256xbf16>, vector<256x128xbf16>, vector<16x128xf32> -> vector<16x128xf32>
    %c0_3 = arith.constant 0 : index
    %c0_4 = arith.constant 0 : index
    %3 = vector.load %arg3[%c0_3, %c0_4] : memref<1x128xf32, #tpu.memory_space<vmem>>, vector<1x128xf32>
    %4 = vector.broadcast %3 : vector<1x128xf32> to vector<16x128xf32>
    %5 = arith.addf %2, %4 : vector<16x128xf32>
    %cst_5 = arith.constant 0.000000e+00 : f32
    %6 = vector.broadcast %cst_5 : f32 to vector<16x128xf32>
    %7 = arith.maximumf %5, %6 : vector<16x128xf32>
    %8 = arith.truncf %7 : vector<16x128xf32> to vector<16x128xbf16>
    %c0_6 = arith.constant 0 : index
    %c0_7 = arith.constant 0 : index
    %9 = vector.load %arg4[%c0_6, %c0_7] : memref<128x128xbf16, #tpu.memory_space<vmem>>, vector<128x128xbf16>
    %cst_8 = arith.constant dense<0.000000e+00> : vector<16x128xf32>
    %10 = tpu.matmul %8, %9, %cst_8 {dimension_numbers = #tpu.dot_dimension_numbers<[1], [0], [0], [1], [0, 0, 1, 1], [], []>} : vector<16x128xbf16>, vector<128x128xbf16>, vector<16x128xf32> -> vector<16x128xf32>
    %c0_9 = arith.constant 0 : index
    %c0_10 = arith.constant 0 : index
    %11 = vector.load %arg5[%c0_9, %c0_10] : memref<1x128xf32, #tpu.memory_space<vmem>>, vector<1x128xf32>
    %12 = vector.broadcast %11 : vector<1x128xf32> to vector<16x128xf32>
    %13 = arith.addf %10, %12 : vector<16x128xf32>
    %cst_11 = arith.constant 0.000000e+00 : f32
    %14 = vector.broadcast %cst_11 : f32 to vector<16x128xf32>
    %15 = arith.maximumf %13, %14 : vector<16x128xf32>
    %c0_12 = arith.constant 0 : index
    %c0_13 = arith.constant 0 : index
    %16 = vector.load %arg11[%c0_12, %c0_13] : memref<16x128xf32, #tpu.memory_space<vmem>>, vector<16x128xf32>
    tpu.vector_store %arg11[%c0_12, %c0_13], %15 {strides = array<i32>} : memref<16x128xf32, #tpu.memory_space<vmem>>, vector<16x128xf32>,
    %17 = arith.truncf %15 : vector<16x128xf32> to vector<16x128xbf16>
    %c0_14 = arith.constant 0 : index
    %c0_15 = arith.constant 0 : index
    %18 = vector.load %arg6[%c0_14, %c0_15] : memref<128x128xbf16, #tpu.memory_space<vmem>>, vector<128x128xbf16>
    %cst_16 = arith.constant dense<0.000000e+00> : vector<16x128xf32>
    %19 = tpu.matmul %17, %18, %cst_16 {dimension_numbers = #tpu.dot_dimension_numbers<[1], [0], [0], [1], [0, 0, 1, 1], [], []>} : vector<16x128xbf16>, vector<128x128xbf16>, vector<16x128xf32> -> vector<16x128xf32>
    %c0_17 = arith.constant 0 : index
    %c0_18 = arith.constant 0 : index
    %20 = vector.load %arg7[%c0_17, %c0_18] : memref<1x128xf32, #tpu.memory_space<vmem>>, vector<1x128xf32>
    %21 = vector.broadcast %20 : vector<1x128xf32> to vector<16x128xf32>
    %22 = arith.addf %19, %21 : vector<16x128xf32>
    %23 = tpu.iota {dimensions = array<i32: 1>} : vector<16x128xi32>
    %c20_i32 = arith.constant 20 : i32
    %24 = vector.broadcast %c20_i32 : i32 to vector<16x128xi32>
    %25 = arith.cmpi sge, %23, %24 : vector<16x128xi32>
    %c25_i32 = arith.constant 25 : i32
    %26 = vector.broadcast %c25_i32 : i32 to vector<16x128xi32>
    %27 = arith.cmpi slt, %23, %26 : vector<16x128xi32>
    %28 = arith.andi %25, %27 : vector<16x128xi1>
    %cst_19 = arith.constant -1.000000e+30 : f32
    %29 = vector.broadcast %cst_19 : f32 to vector<16x128xf32>
    %30 = arith.select %28, %22, %29 : vector<16x128xi1>, vector<16x128xf32>
    %cst_20 = arith.constant dense<0xFF800000> : vector<16xf32>
    %31 = vector.multi_reduction <maximumf>, %30, %cst_20 [1] : vector<16x128xf32> to vector<16xf32>
    %32 = vector.shape_cast %31 : vector<16xf32> to vector<16x1xf32>
    %33 = vector.broadcast %32 : vector<16x1xf32> to vector<16x128xf32>
    %34 = arith.subf %30, %33 : vector<16x128xf32>
    %35 = math.exp %34 : vector<16x128xf32>
    %cst_21 = arith.constant dense<0.000000e+00> : vector<16xf32>
    %36 = vector.multi_reduction <add>, %35, %cst_21 [1] : vector<16x128xf32> to vector<16xf32>
    %37 = vector.shape_cast %36 : vector<16xf32> to vector<16x1xf32>
    %38 = vector.broadcast %37 : vector<16x1xf32> to vector<16x128xf32>
    %39 = arith.divf %35, %38 : vector<16x128xf32>
    %c0_22 = arith.constant 0 : index
    %c0_23 = arith.constant 0 : index
    %40 = vector.load %arg8[%c0_22, %c0_23] : memref<16x128xf32, #tpu.memory_space<vmem>>, vector<16x128xf32>
    %c0_24 = arith.constant 0 : index
    %c0_25 = arith.constant 0 : index
    %41 = vector.load %arg9[%c0_24, %c0_25] : memref<16x128xf32, #tpu.memory_space<vmem>>, vector<16x128xf32>
    %42 = arith.mulf %22, %40 : vector<16x128xf32>
    %43 = arith.addf %42, %41 : vector<16x128xf32>
    %cst_26 = arith.constant 4.13516665 : f32
    %44 = vector.broadcast %cst_26 : f32 to vector<16x128xf32>
    %45 = arith.minimumf %22, %44 : vector<16x128xf32>
    %46 = math.exp %45 : vector<16x128xf32>
    %47 = arith.mulf %46, %40 : vector<16x128xf32>
    %c126_i32 = arith.constant 126 : i32
    %48 = tpu.dynamic_rotate %47 by %c126_i32 dim 1 : vector<16x128xf32>, i32 -> vector<16x128xf32>
    %c2_i32 = arith.constant 2 : i32
    %49 = tpu.dynamic_rotate %43 by %c2_i32 dim 1 : vector<16x128xf32>, i32 -> vector<16x128xf32>
    %c3_i32 = arith.constant 3 : i32
    %50 = vector.broadcast %c3_i32 : i32 to vector<16x128xi32>
    %51 = arith.andi %23, %50 : vector<16x128xi32>
    %c2_i32_27 = arith.constant 2 : i32
    %52 = vector.broadcast %c2_i32_27 : i32 to vector<16x128xi32>
    %53 = arith.cmpi slt, %51, %52 : vector<16x128xi32>
    %cst_28 = arith.constant 5.000000e-01 : f32
    %54 = vector.broadcast %cst_28 : f32 to vector<16x128xf32>
    %55 = arith.mulf %54, %48 : vector<16x128xf32>
    %56 = arith.subf %43, %55 : vector<16x128xf32>
    %cst_29 = arith.constant 5.000000e-01 : f32
    %57 = vector.broadcast %cst_29 : f32 to vector<16x128xf32>
    %58 = arith.mulf %57, %47 : vector<16x128xf32>
    %59 = arith.addf %49, %58 : vector<16x128xf32>
    %cst_30 = arith.constant 1.000000e+00 : f32
    %60 = vector.broadcast %cst_30 : f32 to vector<16x128xf32>
    %61 = arith.subf %59, %60 : vector<16x128xf32>
    %62 = arith.select %53, %56, %61 : vector<16x128xi1>, vector<16x128xf32>
    %c0_31 = arith.constant 0 : index
    %c0_32 = arith.constant 0 : index
    %63 = vector.load %arg10[%c0_31, %c0_32] : memref<1x128xf32, #tpu.memory_space<vmem>>, vector<1x128xf32>
    %cst_33 = arith.constant 0.000000e+00 : f32
    %64 = vector.broadcast %cst_33 : f32 to vector<16x128xf32>
    %65 = arith.maximumf %64, %62 : vector<16x128xf32>
    %66 = vector.broadcast %63 : vector<1x128xf32> to vector<16x128xf32>
    %67 = arith.minimumf %66, %65 : vector<16x128xf32>
    %c20_i32_34 = arith.constant 20 : i32
    %68 = vector.broadcast %c20_i32_34 : i32 to vector<16x128xi32>
    %69 = arith.cmpi slt, %23, %68 : vector<16x128xi32>
    %70 = arith.select %69, %67, %39 : vector<16x128xi1>, vector<16x128xf32>
    %c0_35 = arith.constant 0 : index
    %c0_36 = arith.constant 0 : index
    %71 = vector.load %arg12[%c0_35, %c0_36] : memref<16x128xf32, #tpu.memory_space<vmem>>, vector<16x128xf32>
    tpu.vector_store %arg12[%c0_35, %c0_36], %70 {strides = array<i32>} : memref<16x128xf32, #tpu.memory_space<vmem>>, vector<16x128xf32>,
    return
  }
  func.func @transform_0(%arg0: i32) -> (i32, i32) {
    %c0_i32 = arith.constant 0 : i32
    %c0_i32_0 = arith.constant 0 : i32
    return %arg0, %c0_i32 : i32, i32
  }
  func.func @transform_1(%arg0: i32) -> (i32, i32) {
    %c0_i32 = arith.constant 0 : i32
    %c0_i32_0 = arith.constant 0 : i32
    %c0_i32_1 = arith.constant 0 : i32
    return %c0_i32, %c0_i32_0 : i32, i32
  }
  func.func @transform_2(%arg0: i32) -> (i32, i32) {
    %c0_i32 = arith.constant 0 : i32
    %c0_i32_0 = arith.constant 0 : i32
    %c0_i32_1 = arith.constant 0 : i32
    return %c0_i32, %c0_i32_0 : i32, i32
  }
  func.func @transform_3(%arg0: i32) -> (i32, i32) {
    %c0_i32 = arith.constant 0 : i32
    %c0_i32_0 = arith.constant 0 : i32
    %c0_i32_1 = arith.constant 0 : i32
    return %c0_i32, %c0_i32_0 : i32, i32
  }
  func.func @transform_4(%arg0: i32) -> (i32, i32) {
    %c0_i32 = arith.constant 0 : i32
    %c0_i32_0 = arith.constant 0 : i32
    %c0_i32_1 = arith.constant 0 : i32
    return %c0_i32, %c0_i32_0 : i32, i32
  }
  func.func @transform_5(%arg0: i32) -> (i32, i32) {
    %c0_i32 = arith.constant 0 : i32
    %c0_i32_0 = arith.constant 0 : i32
    %c0_i32_1 = arith.constant 0 : i32
    return %c0_i32, %c0_i32_0 : i32, i32
  }
  func.func @transform_6(%arg0: i32) -> (i32, i32) {
    %c0_i32 = arith.constant 0 : i32
    %c0_i32_0 = arith.constant 0 : i32
    %c0_i32_1 = arith.constant 0 : i32
    return %c0_i32, %c0_i32_0 : i32, i32
  }
  func.func @transform_7(%arg0: i32) -> (i32, i32) {
    %c0_i32 = arith.constant 0 : i32
    %c0_i32_0 = arith.constant 0 : i32
    return %arg0, %c0_i32 : i32, i32
  }
  func.func @transform_8(%arg0: i32) -> (i32, i32) {
    %c0_i32 = arith.constant 0 : i32
    %c0_i32_0 = arith.constant 0 : i32
    return %arg0, %c0_i32 : i32, i32
  }
  func.func @transform_9(%arg0: i32) -> (i32, i32) {
    %c0_i32 = arith.constant 0 : i32
    %c0_i32_0 = arith.constant 0 : i32
    %c0_i32_1 = arith.constant 0 : i32
    return %c0_i32, %c0_i32_0 : i32, i32
  }
  func.func @transform_10(%arg0: i32) -> (i32, i32) {
    %c0_i32 = arith.constant 0 : i32
    %c0_i32_0 = arith.constant 0 : i32
    return %arg0, %c0_i32 : i32, i32
  }
  func.func @transform_11(%arg0: i32) -> (i32, i32) {
    %c0_i32 = arith.constant 0 : i32
    %c0_i32_0 = arith.constant 0 : i32
    return %arg0, %c0_i32 : i32, i32
  }
}

</mosaic_0001>

<llo_original>
// kernel: tpu_custom_call.1
$region0: #{tpu_custom_call.1}
  #allocation0 [shape = 'u32[]', space=smem, size = 0x4, offset = 0x4, fixed_abs, tag = 'smem constant byte address 0x4 - core index']
  #allocation1 [shape = 'u32[72,128]{1,0:T(1,128)}', space=vmem, size = 0x9000, scoped, tag = 'internal scratch']
  %s0 = inlined_call_operand.hbm [shape: bf16[16,256], index: 0, kind: input, shape index: {}]
  %s1 = inlined_call_operand.hbm [shape: bf16[256,128], index: 1, kind: input, shape index: {}]
  %s2 = inlined_call_operand.vmem [shape: f32[1,128], index: 2, kind: input, shape index: {}]
  %s3 = inlined_call_operand.hbm [shape: bf16[128,128], index: 3, kind: input, shape index: {}]
  %s4 = inlined_call_operand.vmem [shape: f32[1,128], index: 4, kind: input, shape index: {}]
  %s5 = inlined_call_operand.hbm [shape: bf16[128,128], index: 5, kind: input, shape index: {}]
  %s6 = inlined_call_operand.vmem [shape: f32[1,128], index: 6, kind: input, shape index: {}]
  %s7 = inlined_call_operand.hbm [shape: f32[16,128], index: 7, kind: input, shape index: {}]
  %s8 = inlined_call_operand.hbm [shape: f32[16,128], index: 8, kind: input, shape index: {}]
  %s9 = inlined_call_operand.vmem [shape: f32[1,128], index: 9, kind: input, shape index: {}]
  %s10 = inlined_call_operand.hbm [shape: f32[16,128], index: 10, kind: output, shape index: {0}]
  %s11 = inlined_call_operand.hbm [shape: f32[16,128], index: 11, kind: output, shape index: {1}]
  %12 = xla_tuple %s10, %s11
  %s13 = sld [smem:[#allocation0]]
  $region82: #{tpu_custom_call.1} parent=0
    _
  %s15 = ssub.s32 1, %s13
  %s16 = scalar_select 0, %s15, %s13
  $region1: #{tpu_custom_call.1} parent=0
    #allocation2 [shape = 'u8[8192]{0}', space=vmem, size = 0x2000, scoped, tag = 'input window, operand 0, single buffered']
    #allocation3 [shape = 's32[1]{0}', space=sflag, size = 0x4, scoped, tag = 'scoped memory for tpu_custom_call.1']
    #allocation4 [shape = 's32[1]{0}', space=sflag, size = 0x4, scoped, tag = 'scoped memory for tpu_custom_call.1']
    #allocation5 [shape = 'u8[65536]{0}', space=vmem, size = 0x10000, scoped, tag = 'input window, operand 1, single buffered']
    #allocation6 [shape = 's32[1]{0}', space=sflag, size = 0x4, scoped, tag = 'scoped memory for tpu_custom_call.1']
    #allocation7 [shape = 'u8[32768]{0}', space=vmem, size = 0x8000, scoped, tag = 'input window, operand 3, single buffered']
    #allocation8 [shape = 'u8[32768]{0}', space=vmem, size = 0x8000, scoped, tag = 'input window, operand 5, single buffered']
    #allocation9 [shape = 's32[1]{0}', space=sflag, size = 0x4, scoped, tag = 'scoped memory for tpu_custom_call.1']
    #allocation10 [shape = 'u8[8192]{0}', space=vmem, size = 0x2000, scoped, tag = 'input window, operand 7, single buffered']
    #allocation11 [shape = 'u8[8192]{0}', space=vmem, size = 0x2000, scoped, tag = 'input window, operand 8, single buffered']
    #allocation12 [shape = 's32[1]{0}', space=sflag, size = 0x4, scoped, tag = 'scoped memory for tpu_custom_call.1']
    #allocation13 [shape = 'u8[8192]{0}', space=vmem, size = 0x2000, scoped, tag = 'output window, operand 0, single buffered']
    #allocation14 [shape = 'u8[8192]{0}', space=vmem, size = 0x2000, scoped, tag = 'output window, operand 1, single buffered']
    #allocation15 [shape = 's32[1]{0}', space=sflag, size = 0x4, scoped, tag = 'scoped memory for tpu_custom_call.1']
    %17 = vsyncpa [#allocation3], 0
    %18 = vsyncpa [#allocation6], 0
    %19 = vsyncpa [#allocation9], 0
    %20 = vsyncpa [#allocation12], 0
    %21 = vsyncpa [#allocation4], 0
    %22 = vsyncpa [#allocation15], 0
    // Predicated region
    $region2: #{tpu_custom_call.1} parent=1 // pred_check
      _
    $region3: #{tpu_custom_call.1} parent=1 // pred_check_branch
      %24 = sbr.rel (0) target = $region5
    $region4: #{tpu_custom_call.1} parent=1 // pred_region
      %26 = vsyncadd [#allocation3], 0
      %s27 = sshll.u32 %s0, 4
      %s28 = int_to_ptr.hbm [resolvable:$true] %s27
      %s29 = sshll.u32 [#allocation2], 4
      %s30 = int_to_ptr.vmem [resolvable:$true] %s29
      %35 = dma.hbm_to_vmem [thread:$0]  %s28, 256, %s30, [#allocation3], 128, 128, 8
    $region5: #{tpu_custom_call.1} parent=1 // pred_fallthru
      _
    // Predicated region
    $region6: #{tpu_custom_call.1} parent=1 // pred_check
      _
    $region7: #{tpu_custom_call.1} parent=1 // pred_check_branch
      %37 = sbr.rel (0) target = $region9
    $region8: #{tpu_custom_call.1} parent=1 // pred_region
      %39 = vsyncadd [#allocation6], 0
      %s40 = sshll.u32 %s1, 4
      %s41 = int_to_ptr.hbm [resolvable:$true] %s40
      %s42 = sshll.u32 [#allocation5], 4
      %s43 = int_to_ptr.vmem [resolvable:$true] %s42
      %48 = dma.hbm_to_vmem [thread:$0]  %s41, 2048, %s43, [#allocation6], 64, 64, 4
    $region9: #{tpu_custom_call.1} parent=1 // pred_fallthru
      _
    // Predicated region
    $region10: #{tpu_custom_call.1} parent=1 // pred_check
      _
    $region11: #{tpu_custom_call.1} parent=1 // pred_check_branch
      %50 = sbr.rel (0) target = $region13
    $region12: #{tpu_custom_call.1} parent=1 // pred_region
      _
    $region13: #{tpu_custom_call.1} parent=1 // pred_fallthru
      _
    // Predicated region
    $region14: #{tpu_custom_call.1} parent=1 // pred_check
      _
    $region15: #{tpu_custom_call.1} parent=1 // pred_check_branch
      %52 = sbr.rel (0) target = $region17
    $region16: #{tpu_custom_call.1} parent=1 // pred_region
      %54 = vsyncadd [#allocation6], 0
      %s55 = sshll.u32 %s3, 4
      %s56 = int_to_ptr.hbm [resolvable:$true] %s55
      %s57 = sshll.u32 [#allocation7], 4
      %s58 = int_to_ptr.vmem [resolvable:$true] %s57
      %63 = dma.hbm_to_vmem [thread:$0]  %s56, 1024, %s58, [#allocation6], 64, 64, 4
    $region17: #{tpu_custom_call.1} parent=1 // pred_fallthru
      _
    // Predicated region
    $region18: #{tpu_custom_call.1} parent=1 // pred_check
      _
    $region19: #{tpu_custom_call.1} parent=1 // pred_check_branch
      %65 = sbr.rel (0) target = $region21
    $region20: #{tpu_custom_call.1} parent=1 // pred_region
      _
    $region21: #{tpu_custom_call.1} parent=1 // pred_fallthru
      _
    // Predicated region
    $region22: #{tpu_custom_call.1} parent=1 // pred_check
      _
    $region23: #{tpu_custom_call.1} parent=1 // pred_check_branch
      %67 = sbr.rel (0) target = $region25
    $region24: #{tpu_custom_call.1} parent=1 // pred_region
      %69 = vsyncadd [#allocation9], 0
      %s70 = sshll.u32 %s5, 4
      %s71 = int_to_ptr.hbm [resolvable:$true] %s70
      %s72 = sshll.u32 [#allocation8], 4
      %s73 = int_to_ptr.vmem [resolvable:$true] %s72
      %78 = dma.hbm_to_vmem [thread:$0]  %s71, 1024, %s73, [#allocation9], 64, 64, 4
    $region25: #{tpu_custom_call.1} parent=1 // pred_fallthru
      _
    // Predicated region
    $region26: #{tpu_custom_call.1} parent=1 // pred_check
      _
    $region27: #{tpu_custom_call.1} parent=1 // pred_check_branch
      %80 = sbr.rel (0) target = $region29
    $region28: #{tpu_custom_call.1} parent=1 // pred_region
      _
    $region29: #{tpu_custom_call.1} parent=1 // pred_fallthru
      _
    // Predicated region
    $region30: #{tpu_custom_call.1} parent=1 // pred_check
      _
    $region31: #{tpu_custom_call.1} parent=1 // pred_check_branch
      %82 = sbr.rel (0) target = $region33
    $region32: #{tpu_custom_call.1} parent=1 // pred_region
      %84 = vsyncadd [#allocation9], 0
      %s85 = sshll.u32 %s7, 4
      %s86 = int_to_ptr.hbm [resolvable:$true] %s85
      %s87 = sshll.u32 [#allocation10], 4
      %s88 = int_to_ptr.vmem [resolvable:$true] %s87
      %93 = dma.hbm_to_vmem [thread:$0]  %s86, 256, %s88, [#allocation9], 128, 128, 8
    $region33: #{tpu_custom_call.1} parent=1 // pred_fallthru
      _
    // Predicated region
    $region34: #{tpu_custom_call.1} parent=1 // pred_check
      _
    $region35: #{tpu_custom_call.1} parent=1 // pred_check_branch
      %95 = sbr.rel (0) target = $region37
    $region36: #{tpu_custom_call.1} parent=1 // pred_region
      %97 = vsyncadd [#allocation12], 0
      %s98 = sshll.u32 %s8, 4
      %s99 = int_to_ptr.hbm [resolvable:$true] %s98
      %s100 = sshll.u32 [#allocation11], 4
      %s101 = int_to_ptr.vmem [resolvable:$true] %s100
      %106 = dma.hbm_to_vmem [thread:$0]  %s99, 256, %s101, [#allocation12], 128, 128, 8
    $region37: #{tpu_custom_call.1} parent=1 // pred_fallthru
      _
    // Predicated region
    $region38: #{tpu_custom_call.1} parent=1 // pred_check
      _
    $region39: #{tpu_custom_call.1} parent=1 // pred_check_branch
      %108 = sbr.rel (0) target = $region41
    $region40: #{tpu_custom_call.1} parent=1 // pred_region
      _
    $region41: #{tpu_custom_call.1} parent=1 // pred_fallthru
      _
    // Predicated region
    $region42: #{tpu_custom_call.1} parent=1 // pred_check
      _
    $region43: #{tpu_custom_call.1} parent=1 // pred_check_branch
      %110 = sbr.rel (0) target = $region45
    $region44: #{tpu_custom_call.1} parent=1 // pred_region
      %112 = dma.done [#allocation3], 256
    $region45: #{tpu_custom_call.1} parent=1 // pred_fallthru
      _
    // Predicated region
    $region46: #{tpu_custom_call.1} parent=1 // pred_check
      _
    $region47: #{tpu_custom_call.1} parent=1 // pred_check_branch
      %114 = sbr.rel (0) target = $region49
    $region48: #{tpu_custom_call.1} parent=1 // pred_region
      %116 = dma.done [#allocation6], 2048
    $region49: #{tpu_custom_call.1} parent=1 // pred_fallthru
      _
    // Predicated region
    $region50: #{tpu_custom_call.1} parent=1 // pred_check
      _
    $region51: #{tpu_custom_call.1} parent=1 // pred_check_branch
      %118 = sbr.rel (0) target = $region53
    $region52: #{tpu_custom_call.1} parent=1 // pred_region
      %120 = dma.done [#allocation6], 1024
    $region53: #{tpu_custom_call.1} parent=1 // pred_fallthru
      _
    // Predicated region
    $region54: #{tpu_custom_call.1} parent=1 // pred_check
      _
    $region55: #{tpu_custom_call.1} parent=1 // pred_check_branch
      %122 = sbr.rel (0) target = $region57
    $region56: #{tpu_custom_call.1} parent=1 // pred_region
      %124 = dma.done [#allocation9], 1024
    $region57: #{tpu_custom_call.1} parent=1 // pred_fallthru
      _
    // Predicated region
    $region58: #{tpu_custom_call.1} parent=1 // pred_check
      _
    $region59: #{tpu_custom_call.1} parent=1 // pred_check_branch
      %126 = sbr.rel (0) target = $region61
    $region60: #{tpu_custom_call.1} parent=1 // pred_region
      %128 = dma.done [#allocation9], 256
    $region61: #{tpu_custom_call.1} parent=1 // pred_fallthru
      _
    // Predicated region
    $region62: #{tpu_custom_call.1} parent=1 // pred_check
      _
    $region63: #{tpu_custom_call.1} parent=1 // pred_check_branch
      %130 = sbr.rel (0) target = $region65
    $region64: #{tpu_custom_call.1} parent=1 // pred_region
      %132 = dma.done [#allocation12], 256
    $region65: #{tpu_custom_call.1} parent=1 // pred_fallthru
      _
    %v133 = vld [vmem:[#allocation2] sm:$0xff]
    %v134 = vld [vmem:[#allocation2 + $0x8] sm:$0xff]
    %v135 = vld [vmem:[#allocation5] sm:$0xf]
    %v136 = vld [vmem:[#allocation5 + $0x4] sm:$0xf]
    %v137 = vld [vmem:[#allocation5 + $0x8] sm:$0xf]
    %v138 = vld [vmem:[#allocation5 + $0xc] sm:$0xf]
    %v139 = vld [vmem:[#allocation5 + $0x10] sm:$0xf]
    %v140 = vld [vmem:[#allocation5 + $0x14] sm:$0xf]
    %v141 = vld [vmem:[#allocation5 + $0x18] sm:$0xf]
    %v142 = vld [vmem:[#allocation5 + $0x1c] sm:$0xf]
    %v143 = vld [vmem:[#allocation5 + $0x20] sm:$0xf]
    %v144 = vld [vmem:[#allocation5 + $0x24] sm:$0xf]
    %v145 = vld [vmem:[#allocation5 + $0x28] sm:$0xf]
    %v146 = vld [vmem:[#allocation5 + $0x2c] sm:$0xf]
    %v147 = vld [vmem:[#allocation5 + $0x30] sm:$0xf]
    %v148 = vld [vmem:[#allocation5 + $0x34] sm:$0xf]
    %v149 = vld [vmem:[#allocation5 + $0x38] sm:$0xf]
    %v150 = vld [vmem:[#allocation5 + $0x3c] sm:$0xf]
    %v151 = vld [vmem:[#allocation5 + $0x40] sm:$0xf]
    %v152 = vld [vmem:[#allocation5 + $0x44] sm:$0xf]
    %v153 = vld [vmem:[#allocation5 + $0x48] sm:$0xf]
    %v154 = vld [vmem:[#allocation5 + $0x4c] sm:$0xf]
    %v155 = vld [vmem:[#allocation5 + $0x50] sm:$0xf]
    %v156 = vld [vmem:[#allocation5 + $0x54] sm:$0xf]
    %v157 = vld [vmem:[#allocation5 + $0x58] sm:$0xf]
    %v158 = vld [vmem:[#allocation5 + $0x5c] sm:$0xf]
    %v159 = vld [vmem:[#allocation5 + $0x60] sm:$0xf]
    %v160 = vld [vmem:[#allocation5 + $0x64] sm:$0xf]
    %v161 = vld [vmem:[#allocation5 + $0x68] sm:$0xf]
    %v162 = vld [vmem:[#allocation5 + $0x6c] sm:$0xf]
    %v163 = vld [vmem:[#allocation5 + $0x70] sm:$0xf]
    %v164 = vld [vmem:[#allocation5 + $0x74] sm:$0xf]
    %v165 = vld [vmem:[#allocation5 + $0x78] sm:$0xf]
    %v166 = vld [vmem:[#allocation5 + $0x7c] sm:$0xf]
    %v167 = vld [vmem:[%s2] sm:$0x1]
    %v169 = vperm.slane %v167, 0
    %v173 = vunpack.c.l.b16 %v133
    %v174 = vunpack.c.h.b16 %v133
    %v175 = vunpack.c.l.b16 %v134
    %v176 = vunpack.c.h.b16 %v134
    %v177 = vpack.c.b16 %v175, %v173
    %v178 = vpack.c.b16 %v176, %v174
    %v213 = vunpack.c.l.b16 %v135
    %v214 = vunpack.c.l.b16 %v136
    %v215 = vunpack.c.l.b16 %v137
    %v216 = vunpack.c.l.b16 %v138
    %v217 = vunpack.c.l.b16 %v139
    %v218 = vunpack.c.l.b16 %v140
    %v219 = vunpack.c.l.b16 %v141
    %v220 = vunpack.c.l.b16 %v142
    %v221 = vunpack.c.l.b16 %v143
    %v222 = vunpack.c.l.b16 %v144
    %v223 = vunpack.c.l.b16 %v145
    %v224 = vunpack.c.l.b16 %v146
    %v225 = vunpack.c.l.b16 %v147
    %v226 = vunpack.c.l.b16 %v148
    %v227 = vunpack.c.l.b16 %v149
    %v228 = vunpack.c.l.b16 %v150
    %v229 = vunpack.c.l.b16 %v151
    %v230 = vunpack.c.l.b16 %v152
    %v231 = vunpack.c.l.b16 %v153
    %v232 = vunpack.c.l.b16 %v154
    %v233 = vunpack.c.l.b16 %v155
    %v234 = vunpack.c.l.b16 %v156
    %v235 = vunpack.c.l.b16 %v157
    %v236 = vunpack.c.l.b16 %v158
    %v237 = vunpack.c.l.b16 %v159
    %v238 = vunpack.c.l.b16 %v160
    %v239 = vunpack.c.l.b16 %v161
    %v240 = vunpack.c.l.b16 %v162
    %v241 = vunpack.c.l.b16 %v163
    %v242 = vunpack.c.l.b16 %v164
    %v243 = vunpack.c.l.b16 %v165
    %v244 = vunpack.c.l.b16 %v166
    %v245 = vpack.c.b16 %v214, %v213
    %v246 = vpack.c.b16 %v216, %v215
    %v247 = vpack.c.b16 %v218, %v217
    %v248 = vpack.c.b16 %v220, %v219
    %v249 = vpack.c.b16 %v222, %v221
    %v250 = vpack.c.b16 %v224, %v223
    %v251 = vpack.c.b16 %v226, %v225
    %v252 = vpack.c.b16 %v228, %v227
    %v253 = vpack.c.b16 %v230, %v229
    %v254 = vpack.c.b16 %v232, %v231
    %v255 = vpack.c.b16 %v234, %v233
    %v256 = vpack.c.b16 %v236, %v235
    %v257 = vpack.c.b16 %v238, %v237
    %v258 = vpack.c.b16 %v240, %v239
    %v259 = vpack.c.b16 %v242, %v241
    %v260 = vpack.c.b16 %v244, %v243
    %277 = vmatpush.bf16.msra.mxu0 %v252
    %278 = vmatpush.bf16.msra.mxu0 %v251
    %279 = vmatpush.bf16.msra.mxu0 %v250
    %280 = vmatpush.bf16.msra.mxu0 %v249
    %281 = vmatpush.bf16.msra.mxu0 %v248
    %282 = vmatpush.bf16.msra.mxu0 %v247
    %283 = vmatpush.bf16.msra.mxu0 %v246
    %284 = vmatpush.bf16.msra.mxu0 %v245
    %285 = vmatmul.bf16.gmra.mxu0 %v177
    %v286 = vpop.f32.mrf.mxu0
    %v287 = vadd.f32 %v169, %v286
    %v288 = vpop.f32.mrf.mxu0
    %v289 = vadd.f32 %v169, %v288
    %290 = vdwg.mxu0
    %291 = vmatpush.bf16.msra.mxu0 %v260
    %292 = vmatpush.bf16.msra.mxu0 %v259
    %293 = vmatpush.bf16.msra.mxu0 %v258
    %294 = vmatpush.bf16.msra.mxu0 %v257
    %295 = vmatpush.bf16.msra.mxu0 %v256
    %296 = vmatpush.bf16.msra.mxu0 %v255
    %297 = vmatpush.bf16.msra.mxu0 %v254
    %298 = vmatpush.bf16.msra.mxu0 %v253
    %299 = vmatmul.bf16.gmra.mxu0 %v178
    %v300 = vpop.f32.mrf.mxu0
    %v301 = vadd.f32 %v287, %v300
    %v302 = vpop.f32.mrf.mxu0
    %v303 = vadd.f32 %v289, %v302
    %304 = vdwg.mxu0
    %v305 = vmax.f32 %v301, 0.0
    %v306 = vmax.f32 %v303, 0.0
    %v307 = vpack.c.bf16 %v306, %v305
    %v308 = vld [vmem:[#allocation7] sm:$0xf]
    %v309 = vld [vmem:[#allocation7 + $0x4] sm:$0xf]
    %v310 = vld [vmem:[#allocation7 + $0x8] sm:$0xf]
    %v311 = vld [vmem:[#allocation7 + $0xc] sm:$0xf]
    %v312 = vld [vmem:[#allocation7 + $0x10] sm:$0xf]
    %v313 = vld [vmem:[#allocation7 + $0x14] sm:$0xf]
    %v314 = vld [vmem:[#allocation7 + $0x18] sm:$0xf]
    %v315 = vld [vmem:[#allocation7 + $0x1c] sm:$0xf]
    %v316 = vld [vmem:[#allocation7 + $0x20] sm:$0xf]
    %v317 = vld [vmem:[#allocation7 + $0x24] sm:$0xf]
    %v318 = vld [vmem:[#allocation7 + $0x28] sm:$0xf]
    %v319 = vld [vmem:[#allocation7 + $0x2c] sm:$0xf]
    %v320 = vld [vmem:[#allocation7 + $0x30] sm:$0xf]
    %v321 = vld [vmem:[#allocation7 + $0x34] sm:$0xf]
    %v322 = vld [vmem:[#allocation7 + $0x38] sm:$0xf]
    %v323 = vld [vmem:[#allocation7 + $0x3c] sm:$0xf]
    %v324 = vld [vmem:[%s4] sm:$0x1]
    %v326 = vperm.slane %v324, 0
    %v344 = vunpack.c.l.b16 %v308
    %v345 = vunpack.c.l.b16 %v309
    %v346 = vunpack.c.l.b16 %v310
    %v347 = vunpack.c.l.b16 %v311
    %v348 = vunpack.c.l.b16 %v312
    %v349 = vunpack.c.l.b16 %v313
    %v350 = vunpack.c.l.b16 %v314
    %v351 = vunpack.c.l.b16 %v315
    %v352 = vunpack.c.l.b16 %v316
    %v353 = vunpack.c.l.b16 %v317
    %v354 = vunpack.c.l.b16 %v318
    %v355 = vunpack.c.l.b16 %v319
    %v356 = vunpack.c.l.b16 %v320
    %v357 = vunpack.c.l.b16 %v321
    %v358 = vunpack.c.l.b16 %v322
    %v359 = vunpack.c.l.b16 %v323
    %v360 = vpack.c.b16 %v345, %v344
    %v361 = vpack.c.b16 %v347, %v346
    %v362 = vpack.c.b16 %v349, %v348
    %v363 = vpack.c.b16 %v351, %v350
    %v364 = vpack.c.b16 %v353, %v352
    %v365 = vpack.c.b16 %v355, %v354
    %v366 = vpack.c.b16 %v357, %v356
    %v367 = vpack.c.b16 %v359, %v358
    %376 = vmatpush.bf16.msra.mxu0 %v367
    %377 = vmatpush.bf16.msra.mxu0 %v366
    %378 = vmatpush.bf16.msra.mxu0 %v365
    %379 = vmatpush.bf16.msra.mxu0 %v364
    %380 = vmatpush.bf16.msra.mxu0 %v363
    %381 = vmatpush.bf16.msra.mxu0 %v362
    %382 = vmatpush.bf16.msra.mxu0 %v361
    %383 = vmatpush.bf16.msra.mxu0 %v360
    %384 = vmatmul.bf16.gmra.mxu0 %v307
    %v385 = vpop.f32.mrf.mxu0
    %v386 = vadd.f32 %v326, %v385
    %v387 = vpop.f32.mrf.mxu0
    %v388 = vadd.f32 %v326, %v387
    %389 = vdwg.mxu0
    %v390 = vmax.f32 %v386, 0.0
    %v391 = vmax.f32 %v388, 0.0
    %392 = vst [vmem:[#allocation13] sm:$0xff] %v390
    %393 = vst [vmem:[#allocation13 + $0x8] sm:$0xff] %v391
    %v394 = vpack.c.bf16 %v391, %v390
    %v395 = vld [vmem:[#allocation8] sm:$0xf]
    %v396 = vld [vmem:[#allocation8 + $0x4] sm:$0xf]
    %v397 = vld [vmem:[#allocation8 + $0x8] sm:$0xf]
    %v398 = vld [vmem:[#allocation8 + $0xc] sm:$0xf]
    %v399 = vld [vmem:[#allocation8 + $0x10] sm:$0xf]
    %v400 = vld [vmem:[#allocation8 + $0x14] sm:$0xf]
    %v401 = vld [vmem:[#allocation8 + $0x18] sm:$0xf]
    %v402 = vld [vmem:[#allocation8 + $0x1c] sm:$0xf]
    %v403 = vld [vmem:[#allocation8 + $0x20] sm:$0xf]
    %v404 = vld [vmem:[#allocation8 + $0x24] sm:$0xf]
    %v405 = vld [vmem:[#allocation8 + $0x28] sm:$0xf]
    %v406 = vld [vmem:[#allocation8 + $0x2c] sm:$0xf]
    %v407 = vld [vmem:[#allocation8 + $0x30] sm:$0xf]
    %v408 = vld [vmem:[#allocation8 + $0x34] sm:$0xf]
    %v409 = vld [vmem:[#allocation8 + $0x38] sm:$0xf]
    %v410 = vld [vmem:[#allocation8 + $0x3c] sm:$0xf]
    %v411 = vld [vmem:[%s6] sm:$0x1]
    %v413 = vperm.slane %v411, 0
    %v431 = vunpack.c.l.b16 %v395
    %v432 = vunpack.c.l.b16 %v396
    %v433 = vunpack.c.l.b16 %v397
    %v434 = vunpack.c.l.b16 %v398
    %v435 = vunpack.c.l.b16 %v399
    %v436 = vunpack.c.l.b16 %v400
    %v437 = vunpack.c.l.b16 %v401
    %v438 = vunpack.c.l.b16 %v402
    %v439 = vunpack.c.l.b16 %v403
    %v440 = vunpack.c.l.b16 %v404
    %v441 = vunpack.c.l.b16 %v405
    %v442 = vunpack.c.l.b16 %v406
    %v443 = vunpack.c.l.b16 %v407
    %v444 = vunpack.c.l.b16 %v408
    %v445 = vunpack.c.l.b16 %v409
    %v446 = vunpack.c.l.b16 %v410
    %v447 = vpack.c.b16 %v432, %v431
    %v448 = vpack.c.b16 %v434, %v433
    %v449 = vpack.c.b16 %v436, %v435
    %v450 = vpack.c.b16 %v438, %v437
    %v451 = vpack.c.b16 %v440, %v439
    %v452 = vpack.c.b16 %v442, %v441
    %v453 = vpack.c.b16 %v444, %v443
    %v454 = vpack.c.b16 %v446, %v445
    %463 = vmatpush.bf16.msra.mxu0 %v454
    %464 = vmatpush.bf16.msra.mxu0 %v453
    %465 = vmatpush.bf16.msra.mxu0 %v452
    %466 = vmatpush.bf16.msra.mxu0 %v451
    %467 = vmatpush.bf16.msra.mxu0 %v450
    %468 = vmatpush.bf16.msra.mxu0 %v449
    %469 = vmatpush.bf16.msra.mxu0 %v448
    %470 = vmatpush.bf16.msra.mxu0 %v447
    %471 = vmatmul.bf16.gmra.mxu0 %v394
    %v472 = vpop.f32.mrf.mxu0
    %v473 = vadd.f32 %v413, %v472
    %v474 = vpop.f32.mrf.mxu0
    %v475 = vadd.f32 %v413, %v474
    %476 = vdwg.mxu0
    %v477 = vlaneseq
    %v478 = vand.u32 %v477, 127
    %vm479 = vcmp.ge.s32.totalorder %v478, 20
    %vm480 = vcmp.lt.s32.totalorder %v478, 25
    %vm481 = vmand %vm479, %vm480
    %v482 = vsel %vm481, %v473, -1e+30
    %v483 = vsel %vm481, %v475, -1e+30
    %484 = vmax.xlane.f32.xlu0 %v482
    %v485 = vpop.xlane.xlu0 %484
    %486 = vmax.xlane.f32.xlu0 %v483
    %v487 = vpop.xlane.xlu0 %486
    %v488 = vsub.f32 %v482, %v485
    %v489 = vsub.f32 %v483, %v487
    %v490 = vmul.f32 %v488, 1.442695
    %v491 = vpow.pop %v490
    %v492 = vmul.f32 %v489, 1.442695
    %v493 = vpow.pop %v492
    %494 = vadd.xlane.f32.xlu0 %v491
    %v495 = vpop.xlane.xlu0 %494
    %496 = vadd.xlane.f32.xlu0 %v493
    %v497 = vpop.xlane.xlu0 %496
    %v498 = vrcp.pop %v495
    %v499 = vmul.f32 %v495, %v498
    %v500 = vsub.f32 1.0, %v499
    %v501 = vmul.f32 %v498, %v500
    %v502 = vadd.f32 %v498, %v501
    %vm503 = vweird.f32 %v495
    %vm504 = vweird.f32 %v498
    %vm505 = vmor %vm503, %vm504
    %v506 = vsel %vm505, %v498, %v502
    %v507 = vand.u32 2147483647, %v495
    %vm508 = vcmp.eq.f32.partialorder %v507, 8.507059e+37
    %v509 = vand.u32 %v495, 2147483648
    %v510 = vor.u32 1.1754944e-38, %v509
    %v511 = vsel %vm508, %v510, %v506
    %v512 = vmul.f32 %v491, %v511
    %v513 = vrcp.pop %v497
    %v514 = vmul.f32 %v497, %v513
    %v515 = vsub.f32 1.0, %v514
    %v516 = vmul.f32 %v513, %v515
    %v517 = vadd.f32 %v513, %v516
    %vm518 = vweird.f32 %v497
    %vm519 = vweird.f32 %v513
    %vm520 = vmor %vm518, %vm519
    %v521 = vsel %vm520, %v513, %v517
    %v522 = vand.u32 2147483647, %v497
    %vm523 = vcmp.eq.f32.partialorder %v522, 8.507059e+37
    %v524 = vand.u32 %v497, 2147483648
    %v525 = vor.u32 1.1754944e-38, %v524
    %v526 = vsel %vm523, %v525, %v521
    %v527 = vmul.f32 %v493, %v526
    %v528 = vld [vmem:[#allocation10] sm:$0xff]
    %v529 = vld [vmem:[#allocation10 + $0x8] sm:$0xff]
    %v530 = vld [vmem:[#allocation11] sm:$0xff]
    %v531 = vld [vmem:[#allocation11 + $0x8] sm:$0xff]
    %v532 = vmul.f32 %v473, %v528
    %v533 = vmul.f32 %v475, %v529
    %v534 = vadd.f32 %v532, %v530
    %v535 = vadd.f32 %v533, %v531
    %v536 = vmin.f32 %v473, 4.1351666
    %v537 = vmin.f32 %v475, 4.1351666
    %v538 = vmul.f32 %v536, 1.442695
    %v539 = vpow.pop %v538
    %v540 = vmul.f32 %v537, 1.442695
    %v541 = vpow.pop %v540
    %v542 = vmul.f32 %v539, %v528
    %v543 = vmul.f32 %v541, %v529
    %544 = vrot.lane.b32.xlu0 %v542, 126
    %v545 = vpop.permute.xlu0 %544
    %546 = vrot.lane.b32.xlu0 %v543, 126
    %v547 = vpop.permute.xlu0 %546
    %548 = vrot.lane.b32.xlu0 %v534, 2
    %v549 = vpop.permute.xlu0 %548
    %550 = vrot.lane.b32.xlu0 %v535, 2
    %v551 = vpop.permute.xlu0 %550
    %v552 = vand.u32 %v478, 3
    %vm553 = vcmp.lt.s32.totalorder %v552, 2
    %v554 = vmul.f32 %v545, 0.5
    %v555 = vmul.f32 %v547, 0.5
    %v556 = vsub.f32 %v534, %v554
    %v557 = vsub.f32 %v535, %v555
    %v558 = vmul.f32 %v542, 0.5
    %v559 = vmul.f32 %v543, 0.5
    %v560 = vadd.f32 %v549, %v558
    %v561 = vadd.f32 %v551, %v559
    %v562 = vsub.f32 %v560, 1.0
    %v563 = vsub.f32 %v561, 1.0
    %v564 = vsel %vm553, %v556, %v562
    %v565 = vsel %vm553, %v557, %v563
    %v566 = vld [vmem:[%s9] sm:$0x1]
    %v567 = vmax.f32 %v564, 0.0
    %v568 = vmax.f32 %v565, 0.0
    %v570 = vperm.slane %v566, 0
    %v572 = vmin.f32 %v570, %v567
    %v573 = vmin.f32 %v570, %v568
    %vm574 = vcmp.lt.s32.totalorder %v478, 20
    %v575 = vsel %vm574, %v572, %v512
    %v576 = vsel %vm574, %v573, %v527
    %577 = vst [vmem:[#allocation14] sm:$0xff] %v575
    %578 = vst [vmem:[#allocation14 + $0x8] sm:$0xff] %v576
    // Predicated region
    $region66: #{tpu_custom_call.1} parent=1 // pred_check
      _
    $region67: #{tpu_custom_call.1} parent=1 // pred_check_branch
      %580 = sbr.rel (0) target = $region69
    $region68: #{tpu_custom_call.1} parent=1 // pred_region
      %582 = vsyncadd [#allocation4], 0
      %s583 = sshll.u32 [#allocation13], 4
      %s584 = int_to_ptr.vmem [resolvable:$true] %s583
      %s585 = sshll.u32 %s10, 4
      %s586 = int_to_ptr.hbm [resolvable:$true] %s585
      %591 = dma.vmem_to_hbm [thread:$0]  %s584, 256, %s586, [#allocation4], 128, 128, 8
    $region69: #{tpu_custom_call.1} parent=1 // pred_fallthru
      _
    // Predicated region
    $region70: #{tpu_custom_call.1} parent=1 // pred_check
      _
    $region71: #{tpu_custom_call.1} parent=1 // pred_check_branch
      %593 = sbr.rel (0) target = $region73
    $region72: #{tpu_custom_call.1} parent=1 // pred_region
      %595 = vsyncadd [#allocation15], 0
      %s596 = sshll.u32 [#allocation14], 4
      %s597 = int_to_ptr.vmem [resolvable:$true] %s596
      %s598 = sshll.u32 %s11, 4
      %s599 = int_to_ptr.hbm [resolvable:$true] %s598
      %604 = dma.vmem_to_hbm [thread:$0]  %s597, 256, %s599, [#allocation15], 128, 128, 8
    $region73: #{tpu_custom_call.1} parent=1 // pred_fallthru
      _
    // Predicated region
    $region74: #{tpu_custom_call.1} parent=1 // pred_check
      _
    $region75: #{tpu_custom_call.1} parent=1 // pred_check_branch
      %606 = sbr.rel (0) target = $region77
    $region76: #{tpu_custom_call.1} parent=1 // pred_region
      %608 = dma.done [#allocation4], 256
    $region77: #{tpu_custom_call.1} parent=1 // pred_fallthru
      _
    // Predicated region
    $region78: #{tpu_custom_call.1} parent=1 // pred_check
      _
    $region79: #{tpu_custom_call.1} parent=1 // pred_check_branch
      %610 = sbr.rel (0) target = $region81
    $region80: #{tpu_custom_call.1} parent=1 // pred_region
      %612 = dma.done [#allocation15], 256
    $region81: #{tpu_custom_call.1} parent=1 // pred_fallthru
      _
    %613 = vsyncpa [#allocation3], 1
    %614 = vsyncpa [#allocation6], 1
    %615 = vsyncpa [#allocation9], 1
    %616 = vsyncpa [#allocation12], 1
    %617 = vsyncpa [#allocation4], 1
    %618 = vsyncpa [#allocation15], 1

</llo_original>
